<compile_context>
chip_gen: v5e
topology: v5e:2x2
jax: 0.10.0
libtpu: 0.0.40
codegen_flags: <defaults>
</compile_context>

<pallas_src>
import numpy as np

import jax
import jax.numpy as jnp
from jax.experimental import pallas as pl
from jax.experimental.pallas import tpu as pltpu


# ---------------------------------------------------------------------------
# Kernel
# ---------------------------------------------------------------------------
def _make_basic_block_kernel(H, W, C):
    """Fused conv1+bn1+relu -> conv2+bn2+add+relu kernel for one batch element."""
    L = H * W

    def kernel(x_ref, w1_ref, b1_ref, w2_ref, b2_ref, mask_ref, out_ref, patch_ref):
        # x_ref:     (C, L)        activation, channel on sublanes, spatial on lanes
        # w{1,2}_ref:(C, 9*C)      im2col weights, BN scale already folded in
        # b{1,2}_ref:(C, 1)        folded BN bias
        # mask_ref:  (9, L)        per-tap validity mask (zero-padding boundary)
        # out_ref:   (C, L)
        # patch_ref: (9*C, L)      VMEM scratch, reused for both convs
        masks = mask_ref[...]                      # (9, L)
        x = x_ref[...]                             # (C, L)

        def im2col(v):
            # Row k*C + c of patch_ref = channel c of v shifted by tap k (3x3, SAME),
            # zeroed outside the image. Shift = pltpu.roll on the lane axis (XLU).
            for k in range(9):
                dh, dw = k // 3 - 1, k % 3 - 1
                sh = (-(dh * W + dw)) % L          # roll amount (jnp.roll convention)
                shifted = pltpu.roll(v, sh, 1) if sh else v
                if dh == 0 and dw == 0:            # center tap: always valid
                    patch_ref[k * C:(k + 1) * C, :] = shifted
                else:
                    patch_ref[k * C:(k + 1) * C, :] = shifted * masks[k:k + 1, :]

        # conv1 (BN1 scale folded into w1) + bias + ReLU  -- h stays on-chip
        im2col(x)
        h = jnp.dot(w1_ref[...], patch_ref[...], preferred_element_type=jnp.float32)
        h = jnp.maximum(h + b1_ref[...], 0.0)

        # conv2 (BN2 scale folded into w2) + bias + residual + ReLU
        im2col(h)
        y = jnp.dot(w2_ref[...], patch_ref[...], preferred_element_type=jnp.float32)
        out_ref[...] = jnp.maximum(y + b2_ref[...] + x, 0.0)

    return kernel


# ---------------------------------------------------------------------------
# Wrapper-side helpers
# ---------------------------------------------------------------------------
def _tap_masks(H, W):
    """(9, H*W) validity masks for the 9 taps of a 3x3 SAME conv."""
    ii, jj = np.meshgrid(np.arange(H), np.arange(W), indexing="ij")
    masks = np.zeros((9, H * W), np.float32)
    for k in range(9):
        dh, dw = k // 3 - 1, k % 3 - 1
        valid = (ii + dh >= 0) & (ii + dh < H) & (jj + dw >= 0) & (jj + dw < W)
        masks[k] = valid.reshape(-1).astype(np.float32)
    return jnp.asarray(masks)


def fold_bn_into_conv(w_hwio, gamma, beta, mean, var, eps=1e-5):
    """Fold inference-mode BN into the conv.

    Returns:
      w2d:  (Cout, 9*Cin) im2col weight matrix (tap-major columns, k = kh*3+kw),
            with the BN scale folded into the output channels.
      bias: (Cout, 1) folded BN bias.
    """
    kh, kw, cin, cout = w_hwio.shape
    scale = gamma / jnp.sqrt(var + eps)                       # (Cout,)
    bias = beta - mean * scale                                # (Cout,)
    w2d = jnp.transpose(w_hwio.reshape(kh * kw, cin, cout), (2, 0, 1))
    w2d = w2d.reshape(cout, kh * kw * cin) * scale[:, None]
    return w2d.astype(jnp.float32), bias.reshape(cout, 1).astype(jnp.float32)


def basic_block_forward(x_nchw, params):
    """BasicBlock forward (stride=1, downsample=None). NCHW in / NCHW out."""
    N, C, H, W = x_nchw.shape
    L = H * W
    x2d = x_nchw.reshape(N, C, L).astype(jnp.float32)         # free reshape, no pad/transpose

    w1, b1 = fold_bn_into_conv(params["w1"], params["bn1_gamma"], params["bn1_beta"],
                               params["bn1_mean"], params["bn1_var"])
    w2, b2 = fold_bn_into_conv(params["w2"], params["bn2_gamma"], params["bn2_beta"],
                               params["bn2_mean"], params["bn2_var"])
    masks = _tap_masks(H, W)

    out = pl.pallas_call(
        _make_basic_block_kernel(H, W, C),
        out_shape=jax.ShapeDtypeStruct((N, C, L), jnp.float32),
        grid_spec=pltpu.PrefetchScalarGridSpec(
            num_scalar_prefetch=0,
            grid=(N,),
            in_specs=[
                pl.BlockSpec((pl.Squeezed(), C, L), lambda n: (n, 0, 0)),   # x
                pl.BlockSpec((C, 9 * C), lambda n: (0, 0)),                 # w1 (folded)
                pl.BlockSpec((C, 1), lambda n: (0, 0)),                     # b1
                pl.BlockSpec((C, 9 * C), lambda n: (0, 0)),                 # w2 (folded)
                pl.BlockSpec((C, 1), lambda n: (0, 0)),                     # b2
                pl.BlockSpec((9, L), lambda n: (0, 0)),                     # tap masks
            ],
            out_specs=pl.BlockSpec((pl.Squeezed(), C, L), lambda n: (n, 0, 0)),
            scratch_shapes=[pltpu.VMEM((9 * C, L), jnp.float32)],           # im2col patches
        ),
        compiler_params=pltpu.CompilerParams(
            dimension_semantics=("parallel",)),                             # v7x: 2 TCs
    )(x2d, w1, b1, w2, b2, masks)

    return out.reshape(N, C, H, W)


# ---------------------------------------------------------------------------
# Pure-JAX reference (lax conv) for the correctness check
# ---------------------------------------------------------------------------
def reference_forward(x_nchw, params, eps=1e-5):
    C = x_nchw.shape[1]

    def conv(inp, w_hwio):
        return jax.lax.conv_general_dilated(
            inp, w_hwio, window_strides=(1, 1), padding="SAME",
            dimension_numbers=("NCHW", "HWIO", "NCHW"))

    def bn(y, prefix):
        g, b = params[prefix + "_gamma"], params[prefix + "_beta"]
        m, v = params[prefix + "_mean"], params[prefix + "_var"]
        s = g / jnp.sqrt(v + eps)
        return y * s.reshape(1, C, 1, 1) + (b - m * s).reshape(1, C, 1, 1)

    x = x_nchw.astype(jnp.float32)
    h = jnp.maximum(bn(conv(x, params["w1"]), "bn1"), 0.0)
    out = jnp.maximum(bn(conv(h, params["w2"]), "bn2") + x, 0.0)
    return out


# ---------------------------------------------------------------------------
# Demo / self-test
# ---------------------------------------------------------------------------
if __name__ == "__main__":
    # BasicBlock(inplanes=8, planes=8, stride=1, downsample=None)
    N, C, H, W = 2, 8, 16, 16
    key = jax.random.PRNGKey(0)
    kx, kw1, kw2, kbn = jax.random.split(key, 4)
    kg1, kb1, km1, kv1, kg2, kb2, km2, kv2 = jax.random.split(kbn, 8)

    x = jax.random.normal(kx, (N, C, H, W), dtype=jnp.float32)   # PyTorch NCHW input

    params = {
        # conv weights in HWIO layout (3, 3, Cin, Cout)
        "w1": 0.1 * jax.random.normal(kw1, (3, 3, C, C), dtype=jnp.float32),
        "w2": 0.1 * jax.random.normal(kw2, (3, 3, C, C), dtype=jnp.float32),
        # non-trivial BatchNorm parameters / running stats (inference mode)
        "bn1_gamma": 1.0 + 0.1 * jax.random.normal(kg1, (C,), dtype=jnp.float32),
        "bn1_beta": 0.1 * jax.random.normal(kb1, (C,), dtype=jnp.float32),
        "bn1_mean": 0.1 * jax.random.normal(km1, (C,), dtype=jnp.float32),
        "bn1_var": 1.0 + 0.5 * jax.random.uniform(kv1, (C,), dtype=jnp.float32),
        "bn2_gamma": 1.0 + 0.1 * jax.random.normal(kg2, (C,), dtype=jnp.float32),
        "bn2_beta": 0.1 * jax.random.normal(kb2, (C,), dtype=jnp.float32),
        "bn2_mean": 0.1 * jax.random.normal(km2, (C,), dtype=jnp.float32),
        "bn2_var": 1.0 + 0.5 * jax.random.uniform(kv2, (C,), dtype=jnp.float32),
    }

    out = jax.block_until_ready(basic_block_forward(x, params))
    ref = jax.block_until_ready(reference_forward(x, params))

    assert out.shape == (N, C, H, W)
    assert jnp.allclose(out, ref, atol=1e-3, rtol=1e-3), "mismatch vs reference"

    print("KERNEL_OK")
</pallas_src>

<mosaic_0001>
module attributes {stable_mosaic.version = 11 : i64} {
  func.func @kernel(%arg0: i32, %arg1: memref<1x8x256xf32, #tpu.memory_space<vmem>>, %arg2: memref<8x72xf32, #tpu.memory_space<vmem>>, %arg3: memref<8x1xf32, #tpu.memory_space<vmem>>, %arg4: memref<8x72xf32, #tpu.memory_space<vmem>>, %arg5: memref<8x1xf32, #tpu.memory_space<vmem>>, %arg6: memref<9x256xf32, #tpu.memory_space<vmem>>, %arg7: memref<1x8x256xf32, #tpu.memory_space<vmem>>, %arg8: memref<72x256xf32, #tpu.memory_space<vmem>>) attributes {dimension_semantics = [#tpu.dimension_semantics<parallel>], iteration_bounds = array<i64: 2>, scalar_prefetch = 0 : i64, scratch_operands = 1 : i64, tpu.core_type = #tpu.core_type<tc>, window_params = [{transform_indices = @transform_0, window_bounds = array<i64: 1, 8, 256>}, {pipeline_mode = #tpu.pipeline_mode<synchronous>, transform_indices = @transform_1, window_bounds = array<i64: 8, 72>}, {pipeline_mode = #tpu.pipeline_mode<synchronous>, transform_indices = @transform_2, window_bounds = array<i64: 8, 1>}, {pipeline_mode = #tpu.pipeline_mode<synchronous>, transform_indices = @transform_3, window_bounds = array<i64: 8, 72>}, {pipeline_mode = #tpu.pipeline_mode<synchronous>, transform_indices = @transform_4, window_bounds = array<i64: 8, 1>}, {pipeline_mode = #tpu.pipeline_mode<synchronous>, transform_indices = @transform_5, window_bounds = array<i64: 9, 256>}, {transform_indices = @transform_6, window_bounds = array<i64: 1, 8, 256>}]} {
    %c0 = arith.constant 0 : index
    %c0_0 = arith.constant 0 : index
    %0 = vector.load %arg6[%c0, %c0_0] : memref<9x256xf32, #tpu.memory_space<vmem>>, vector<9x256xf32>
    %c0_1 = arith.constant 0 : index
    %c0_2 = arith.constant 0 : index
    %c0_3 = arith.constant 0 : index
    %1 = vector.load %arg1[%c0_1, %c0_2, %c0_3] : memref<1x8x256xf32, #tpu.memory_space<vmem>>, vector<1x8x256xf32>
    %2 = vector.shape_cast %1 : vector<1x8x256xf32> to vector<8x256xf32>
    %c17_i32 = arith.constant 17 : i32
    %3 = tpu.dynamic_rotate %2 by %c17_i32 dim 1 : vector<8x256xf32>, i32 -> vector<8x256xf32>
    %4 = vector.extract_strided_slice %0 {offsets = [0, 0], sizes = [1, 256], strides = [1, 1]} : vector<9x256xf32> to vector<1x256xf32>
    %5 = vector.broadcast %4 : vector<1x256xf32> to vector<8x256xf32>
    %6 = arith.mulf %3, %5 : vector<8x256xf32>
    %c0_4 = arith.constant 0 : index
    %c0_5 = arith.constant 0 : index
    %7 = vector.load %arg8[%c0_4, %c0_5] : memref<72x256xf32, #tpu.memory_space<vmem>>, vector<8x256xf32>
    tpu.vector_store %arg8[%c0_4, %c0_5], %6 {strides = array<i32>} : memref<72x256xf32, #tpu.memory_space<vmem>>, vector<8x256xf32>,
    %c16_i32 = arith.constant 16 : i32
    %8 = tpu.dynamic_rotate %2 by %c16_i32 dim 1 : vector<8x256xf32>, i32 -> vector<8x256xf32>
    %9 = vector.extract_strided_slice %0 {offsets = [1, 0], sizes = [1, 256], strides = [1, 1]} : vector<9x256xf32> to vector<1x256xf32>
    %10 = vector.broadcast %9 : vector<1x256xf32> to vector<8x256xf32>
    %11 = arith.mulf %8, %10 : vector<8x256xf32>
    %c8 = arith.constant 8 : index
    %c0_6 = arith.constant 0 : index
    %12 = vector.load %arg8[%c8, %c0_6] : memref<72x256xf32, #tpu.memory_space<vmem>>, vector<8x256xf32>
    tpu.vector_store %arg8[%c8, %c0_6], %11 {strides = array<i32>} : memref<72x256xf32, #tpu.memory_space<vmem>>, vector<8x256xf32>,
    %c15_i32 = arith.constant 15 : i32
    %13 = tpu.dynamic_rotate %2 by %c15_i32 dim 1 : vector<8x256xf32>, i32 -> vector<8x256xf32>
    %14 = vector.extract_strided_slice %0 {offsets = [2, 0], sizes = [1, 256], strides = [1, 1]} : vector<9x256xf32> to vector<1x256xf32>
    %15 = vector.broadcast %14 : vector<1x256xf32> to vector<8x256xf32>
    %16 = arith.mulf %13, %15 : vector<8x256xf32>
    %c16 = arith.constant 16 : index
    %c0_7 = arith.constant 0 : index
    %17 = vector.load %arg8[%c16, %c0_7] : memref<72x256xf32, #tpu.memory_space<vmem>>, vector<8x256xf32>
    tpu.vector_store %arg8[%c16, %c0_7], %16 {strides = array<i32>} : memref<72x256xf32, #tpu.memory_space<vmem>>, vector<8x256xf32>,
    %c1_i32 = arith.constant 1 : i32
    %18 = tpu.dynamic_rotate %2 by %c1_i32 dim 1 : vector<8x256xf32>, i32 -> vector<8x256xf32>
    %19 = vector.extract_strided_slice %0 {offsets = [3, 0], sizes = [1, 256], strides = [1, 1]} : vector<9x256xf32> to vector<1x256xf32>
    %20 = vector.broadcast %19 : vector<1x256xf32> to vector<8x256xf32>
    %21 = arith.mulf %18, %20 : vector<8x256xf32>
    %c24 = arith.constant 24 : index
    %c0_8 = arith.constant 0 : index
    %22 = vector.load %arg8[%c24, %c0_8] : memref<72x256xf32, #tpu.memory_space<vmem>>, vector<8x256xf32>
    tpu.vector_store %arg8[%c24, %c0_8], %21 {strides = array<i32>} : memref<72x256xf32, #tpu.memory_space<vmem>>, vector<8x256xf32>,
    %c32 = arith.constant 32 : index
    %c0_9 = arith.constant 0 : index
    %23 = vector.load %arg8[%c32, %c0_9] : memref<72x256xf32, #tpu.memory_space<vmem>>, vector<8x256xf32>
    tpu.vector_store %arg8[%c32, %c0_9], %2 {strides = array<i32>} : memref<72x256xf32, #tpu.memory_space<vmem>>, vector<8x256xf32>,
    %c255_i32 = arith.constant 255 : i32
    %24 = tpu.dynamic_rotate %2 by %c255_i32 dim 1 : vector<8x256xf32>, i32 -> vector<8x256xf32>
    %25 = vector.extract_strided_slice %0 {offsets = [5, 0], sizes = [1, 256], strides = [1, 1]} : vector<9x256xf32> to vector<1x256xf32>
    %26 = vector.broadcast %25 : vector<1x256xf32> to vector<8x256xf32>
    %27 = arith.mulf %24, %26 : vector<8x256xf32>
    %c40 = arith.constant 40 : index
    %c0_10 = arith.constant 0 : index
    %28 = vector.load %arg8[%c40, %c0_10] : memref<72x256xf32, #tpu.memory_space<vmem>>, vector<8x256xf32>
    tpu.vector_store %arg8[%c40, %c0_10], %27 {strides = array<i32>} : memref<72x256xf32, #tpu.memory_space<vmem>>, vector<8x256xf32>,
    %c241_i32 = arith.constant 241 : i32
    %29 = tpu.dynamic_rotate %2 by %c241_i32 dim 1 : vector<8x256xf32>, i32 -> vector<8x256xf32>
    %30 = vector.extract_strided_slice %0 {offsets = [6, 0], sizes = [1, 256], strides = [1, 1]} : vector<9x256xf32> to vector<1x256xf32>
    %31 = vector.broadcast %30 : vector<1x256xf32> to vector<8x256xf32>
    %32 = arith.mulf %29, %31 : vector<8x256xf32>
    %c48 = arith.constant 48 : index
    %c0_11 = arith.constant 0 : index
    %33 = vector.load %arg8[%c48, %c0_11] : memref<72x256xf32, #tpu.memory_space<vmem>>, vector<8x256xf32>
    tpu.vector_store %arg8[%c48, %c0_11], %32 {strides = array<i32>} : memref<72x256xf32, #tpu.memory_space<vmem>>, vector<8x256xf32>,
    %c240_i32 = arith.constant 240 : i32
    %34 = tpu.dynamic_rotate %2 by %c240_i32 dim 1 : vector<8x256xf32>, i32 -> vector<8x256xf32>
    %35 = vector.extract_strided_slice %0 {offsets = [7, 0], sizes = [1, 256], strides = [1, 1]} : vector<9x256xf32> to vector<1x256xf32>
    %36 = vector.broadcast %35 : vector<1x256xf32> to vector<8x256xf32>
    %37 = arith.mulf %34, %36 : vector<8x256xf32>
    %c56 = arith.constant 56 : index
    %c0_12 = arith.constant 0 : index
    %38 = vector.load %arg8[%c56, %c0_12] : memref<72x256xf32, #tpu.memory_space<vmem>>, vector<8x256xf32>
    tpu.vector_store %arg8[%c56, %c0_12], %37 {strides = array<i32>} : memref<72x256xf32, #tpu.memory_space<vmem>>, vector<8x256xf32>,
    %c239_i32 = arith.constant 239 : i32
    %39 = tpu.dynamic_rotate %2 by %c239_i32 dim 1 : vector<8x256xf32>, i32 -> vector<8x256xf32>
    %40 = vector.extract_strided_slice %0 {offsets = [8, 0], sizes = [1, 256], strides = [1, 1]} : vector<9x256xf32> to vector<1x256xf32>
    %41 = vector.broadcast %40 : vector<1x256xf32> to vector<8x256xf32>
    %42 = arith.mulf %39, %41 : vector<8x256xf32>
    %c64 = arith.constant 64 : index
    %c0_13 = arith.constant 0 : index
    %43 = vector.load %arg8[%c64, %c0_13] : memref<72x256xf32, #tpu.memory_space<vmem>>, vector<8x256xf32>
    tpu.vector_store %arg8[%c64, %c0_13], %42 {strides = array<i32>} : memref<72x256xf32, #tpu.memory_space<vmem>>, vector<8x256xf32>,
    %c0_14 = arith.constant 0 : index
    %c0_15 = arith.constant 0 : index
    %44 = vector.load %arg2[%c0_14, %c0_15] : memref<8x72xf32, #tpu.memory_space<vmem>>, vector<8x72xf32>
    %c0_16 = arith.constant 0 : index
    %c0_17 = arith.constant 0 : index
    %45 = vector.load %arg8[%c0_16, %c0_17] : memref<72x256xf32, #tpu.memory_space<vmem>>, vector<72x256xf32>
    %cst = arith.constant dense<0.000000e+00> : vector<8x256xf32>
    %46 = tpu.matmul %44, %45, %cst {dimension_numbers = #tpu.dot_dimension_numbers<[1], [0], [0], [1], [0, 0, 1, 1], [], []>} : vector<8x72xf32>, vector<72x256xf32>, vector<8x256xf32> -> vector<8x256xf32>
    %c0_18 = arith.constant 0 : index
    %c0_19 = arith.constant 0 : index
    %47 = vector.load %arg3[%c0_18, %c0_19] : memref<8x1xf32, #tpu.memory_space<vmem>>, vector<8x1xf32>
    %48 = vector.broadcast %47 : vector<8x1xf32> to vector<8x256xf32>
    %49 = arith.addf %46, %48 : vector<8x256xf32>
    %cst_20 = arith.constant 0.000000e+00 : f32
    %50 = vector.broadcast %cst_20 : f32 to vector<8x256xf32>
    %51 = arith.maximumf %49, %50 : vector<8x256xf32>
    %c17_i32_21 = arith.constant 17 : i32
    %52 = tpu.dynamic_rotate %51 by %c17_i32_21 dim 1 : vector<8x256xf32>, i32 -> vector<8x256xf32>
    %53 = vector.extract_strided_slice %0 {offsets = [0, 0], sizes = [1, 256], strides = [1, 1]} : vector<9x256xf32> to vector<1x256xf32>
    %54 = vector.broadcast %53 : vector<1x256xf32> to vector<8x256xf32>
    %55 = arith.mulf %52, %54 : vector<8x256xf32>
    %c0_22 = arith.constant 0 : index
    %c0_23 = arith.constant 0 : index
    %56 = vector.load %arg8[%c0_22, %c0_23] : memref<72x256xf32, #tpu.memory_space<vmem>>, vector<8x256xf32>
    tpu.vector_store %arg8[%c0_22, %c0_23], %55 {strides = array<i32>} : memref<72x256xf32, #tpu.memory_space<vmem>>, vector<8x256xf32>,
    %c16_i32_24 = arith.constant 16 : i32
    %57 = tpu.dynamic_rotate %51 by %c16_i32_24 dim 1 : vector<8x256xf32>, i32 -> vector<8x256xf32>
    %58 = vector.extract_strided_slice %0 {offsets = [1, 0], sizes = [1, 256], strides = [1, 1]} : vector<9x256xf32> to vector<1x256xf32>
    %59 = vector.broadcast %58 : vector<1x256xf32> to vector<8x256xf32>
    %60 = arith.mulf %57, %59 : vector<8x256xf32>
    %c8_25 = arith.constant 8 : index
    %c0_26 = arith.constant 0 : index
    %61 = vector.load %arg8[%c8_25, %c0_26] : memref<72x256xf32, #tpu.memory_space<vmem>>, vector<8x256xf32>
    tpu.vector_store %arg8[%c8_25, %c0_26], %60 {strides = array<i32>} : memref<72x256xf32, #tpu.memory_space<vmem>>, vector<8x256xf32>,
    %c15_i32_27 = arith.constant 15 : i32
    %62 = tpu.dynamic_rotate %51 by %c15_i32_27 dim 1 : vector<8x256xf32>, i32 -> vector<8x256xf32>
    %63 = vector.extract_strided_slice %0 {offsets = [2, 0], sizes = [1, 256], strides = [1, 1]} : vector<9x256xf32> to vector<1x256xf32>
    %64 = vector.broadcast %63 : vector<1x256xf32> to vector<8x256xf32>
    %65 = arith.mulf %62, %64 : vector<8x256xf32>
    %c16_28 = arith.constant 16 : index
    %c0_29 = arith.constant 0 : index
    %66 = vector.load %arg8[%c16_28, %c0_29] : memref<72x256xf32, #tpu.memory_space<vmem>>, vector<8x256xf32>
    tpu.vector_store %arg8[%c16_28, %c0_29], %65 {strides = array<i32>} : memref<72x256xf32, #tpu.memory_space<vmem>>, vector<8x256xf32>,
    %c1_i32_30 = arith.constant 1 : i32
    %67 = tpu.dynamic_rotate %51 by %c1_i32_30 dim 1 : vector<8x256xf32>, i32 -> vector<8x256xf32>
    %68 = vector.extract_strided_slice %0 {offsets = [3, 0], sizes = [1, 256], strides = [1, 1]} : vector<9x256xf32> to vector<1x256xf32>
    %69 = vector.broadcast %68 : vector<1x256xf32> to vector<8x256xf32>
    %70 = arith.mulf %67, %69 : vector<8x256xf32>
    %c24_31 = arith.constant 24 : index
    %c0_32 = arith.constant 0 : index
    %71 = vector.load %arg8[%c24_31, %c0_32] : memref<72x256xf32, #tpu.memory_space<vmem>>, vector<8x256xf32>
    tpu.vector_store %arg8[%c24_31, %c0_32], %70 {strides = array<i32>} : memref<72x256xf32, #tpu.memory_space<vmem>>, vector<8x256xf32>,
    %c32_33 = arith.constant 32 : index
    %c0_34 = arith.constant 0 : index
    %72 = vector.load %arg8[%c32_33, %c0_34] : memref<72x256xf32, #tpu.memory_space<vmem>>, vector<8x256xf32>
    tpu.vector_store %arg8[%c32_33, %c0_34], %51 {strides = array<i32>} : memref<72x256xf32, #tpu.memory_space<vmem>>, vector<8x256xf32>,
    %c255_i32_35 = arith.constant 255 : i32
    %73 = tpu.dynamic_rotate %51 by %c255_i32_35 dim 1 : vector<8x256xf32>, i32 -> vector<8x256xf32>
    %74 = vector.extract_strided_slice %0 {offsets = [5, 0], sizes = [1, 256], strides = [1, 1]} : vector<9x256xf32> to vector<1x256xf32>
    %75 = vector.broadcast %74 : vector<1x256xf32> to vector<8x256xf32>
    %76 = arith.mulf %73, %75 : vector<8x256xf32>
    %c40_36 = arith.constant 40 : index
    %c0_37 = arith.constant 0 : index
    %77 = vector.load %arg8[%c40_36, %c0_37] : memref<72x256xf32, #tpu.memory_space<vmem>>, vector<8x256xf32>
    tpu.vector_store %arg8[%c40_36, %c0_37], %76 {strides = array<i32>} : memref<72x256xf32, #tpu.memory_space<vmem>>, vector<8x256xf32>,
    %c241_i32_38 = arith.constant 241 : i32
    %78 = tpu.dynamic_rotate %51 by %c241_i32_38 dim 1 : vector<8x256xf32>, i32 -> vector<8x256xf32>
    %79 = vector.extract_strided_slice %0 {offsets = [6, 0], sizes = [1, 256], strides = [1, 1]} : vector<9x256xf32> to vector<1x256xf32>
    %80 = vector.broadcast %79 : vector<1x256xf32> to vector<8x256xf32>
    %81 = arith.mulf %78, %80 : vector<8x256xf32>
    %c48_39 = arith.constant 48 : index
    %c0_40 = arith.constant 0 : index
    %82 = vector.load %arg8[%c48_39, %c0_40] : memref<72x256xf32, #tpu.memory_space<vmem>>, vector<8x256xf32>
    tpu.vector_store %arg8[%c48_39, %c0_40], %81 {strides = array<i32>} : memref<72x256xf32, #tpu.memory_space<vmem>>, vector<8x256xf32>,
    %c240_i32_41 = arith.constant 240 : i32
    %83 = tpu.dynamic_rotate %51 by %c240_i32_41 dim 1 : vector<8x256xf32>, i32 -> vector<8x256xf32>
    %84 = vector.extract_strided_slice %0 {offsets = [7, 0], sizes = [1, 256], strides = [1, 1]} : vector<9x256xf32> to vector<1x256xf32>
    %85 = vector.broadcast %84 : vector<1x256xf32> to vector<8x256xf32>
    %86 = arith.mulf %83, %85 : vector<8x256xf32>
    %c56_42 = arith.constant 56 : index
    %c0_43 = arith.constant 0 : index
    %87 = vector.load %arg8[%c56_42, %c0_43] : memref<72x256xf32, #tpu.memory_space<vmem>>, vector<8x256xf32>
    tpu.vector_store %arg8[%c56_42, %c0_43], %86 {strides = array<i32>} : memref<72x256xf32, #tpu.memory_space<vmem>>, vector<8x256xf32>,
    %c239_i32_44 = arith.constant 239 : i32
    %88 = tpu.dynamic_rotate %51 by %c239_i32_44 dim 1 : vector<8x256xf32>, i32 -> vector<8x256xf32>
    %89 = vector.extract_strided_slice %0 {offsets = [8, 0], sizes = [1, 256], strides = [1, 1]} : vector<9x256xf32> to vector<1x256xf32>
    %90 = vector.broadcast %89 : vector<1x256xf32> to vector<8x256xf32>
    %91 = arith.mulf %88, %90 : vector<8x256xf32>
    %c64_45 = arith.constant 64 : index
    %c0_46 = arith.constant 0 : index
    %92 = vector.load %arg8[%c64_45, %c0_46] : memref<72x256xf32, #tpu.memory_space<vmem>>, vector<8x256xf32>
    tpu.vector_store %arg8[%c64_45, %c0_46], %91 {strides = array<i32>} : memref<72x256xf32, #tpu.memory_space<vmem>>, vector<8x256xf32>,
    %c0_47 = arith.constant 0 : index
    %c0_48 = arith.constant 0 : index
    %93 = vector.load %arg4[%c0_47, %c0_48] : memref<8x72xf32, #tpu.memory_space<vmem>>, vector<8x72xf32>
    %c0_49 = arith.constant 0 : index
    %c0_50 = arith.constant 0 : index
    %94 = vector.load %arg8[%c0_49, %c0_50] : memref<72x256xf32, #tpu.memory_space<vmem>>, vector<72x256xf32>
    %cst_51 = arith.constant dense<0.000000e+00> : vector<8x256xf32>
    %95 = tpu.matmul %93, %94, %cst_51 {dimension_numbers = #tpu.dot_dimension_numbers<[1], [0], [0], [1], [0, 0, 1, 1], [], []>} : vector<8x72xf32>, vector<72x256xf32>, vector<8x256xf32> -> vector<8x256xf32>
    %c0_52 = arith.constant 0 : index
    %c0_53 = arith.constant 0 : index
    %96 = vector.load %arg5[%c0_52, %c0_53] : memref<8x1xf32, #tpu.memory_space<vmem>>, vector<8x1xf32>
    %97 = vector.broadcast %96 : vector<8x1xf32> to vector<8x256xf32>
    %98 = arith.addf %95, %97 : vector<8x256xf32>
    %99 = arith.addf %98, %2 : vector<8x256xf32>
    %cst_54 = arith.constant 0.000000e+00 : f32
    %100 = vector.broadcast %cst_54 : f32 to vector<8x256xf32>
    %101 = arith.maximumf %99, %100 : vector<8x256xf32>
    %c0_55 = arith.constant 0 : index
    %c0_56 = arith.constant 0 : index
    %c0_57 = arith.constant 0 : index
    %102 = vector.load %arg7[%c0_55, %c0_56, %c0_57] : memref<1x8x256xf32, #tpu.memory_space<vmem>>, vector<1x8x256xf32>
    %103 = vector.shape_cast %102 : vector<1x8x256xf32> to vector<8x256xf32>
    %104 = vector.shape_cast %101 : vector<8x256xf32> to vector<1x8x256xf32>
    tpu.vector_store %arg7[%c0_55, %c0_56, %c0_57], %104 {strides = array<i32>} : memref<1x8x256xf32, #tpu.memory_space<vmem>>, vector<1x8x256xf32>,
    return
  }
  func.func @transform_0(%arg0: i32) -> (i32, i32, i32) {
    %c0_i32 = arith.constant 0 : i32
    %c0_i32_0 = arith.constant 0 : i32
    %c0_i32_1 = arith.constant 0 : i32
    return %arg0, %c0_i32, %c0_i32_0 : i32, i32, i32
  }
  func.func @transform_1(%arg0: i32) -> (i32, i32) {
    %c0_i32 = arith.constant 0 : i32
    %c0_i32_0 = arith.constant 0 : i32
    %c0_i32_1 = arith.constant 0 : i32
    return %c0_i32, %c0_i32_0 : i32, i32
  }
  func.func @transform_2(%arg0: i32) -> (i32, i32) {
    %c0_i32 = arith.constant 0 : i32
    %c0_i32_0 = arith.constant 0 : i32
    %c0_i32_1 = arith.constant 0 : i32
    return %c0_i32, %c0_i32_0 : i32, i32
  }
  func.func @transform_3(%arg0: i32) -> (i32, i32) {
    %c0_i32 = arith.constant 0 : i32
    %c0_i32_0 = arith.constant 0 : i32
    %c0_i32_1 = arith.constant 0 : i32
    return %c0_i32, %c0_i32_0 : i32, i32
  }
  func.func @transform_4(%arg0: i32) -> (i32, i32) {
    %c0_i32 = arith.constant 0 : i32
    %c0_i32_0 = arith.constant 0 : i32
    %c0_i32_1 = arith.constant 0 : i32
    return %c0_i32, %c0_i32_0 : i32, i32
  }
  func.func @transform_5(%arg0: i32) -> (i32, i32) {
    %c0_i32 = arith.constant 0 : i32
    %c0_i32_0 = arith.constant 0 : i32
    %c0_i32_1 = arith.constant 0 : i32
    return %c0_i32, %c0_i32_0 : i32, i32
  }
  func.func @transform_6(%arg0: i32) -> (i32, i32, i32) {
    %c0_i32 = arith.constant 0 : i32
    %c0_i32_0 = arith.constant 0 : i32
    %c0_i32_1 = arith.constant 0 : i32
    return %arg0, %c0_i32, %c0_i32_0 : i32, i32, i32
  }
}

</mosaic_0001>

<llo_original>
// kernel: tpu_custom_call.1
$region0: #{tpu_custom_call.1}
  #allocation0 [shape = 'u32[]', space=smem, size = 0x4, offset = 0x4, fixed_abs, tag = 'smem constant byte address 0x4 - core index']
  #allocation1 [shape = 'u32[72,128]{1,0:T(1,128)}', space=vmem, size = 0x9000, scoped, tag = 'internal scratch']
  #allocation2 [shape = 'f32[72,256]{1,0:T(8,128)}', space=vmem, size = 0x12000, scoped, tag = 'scratch operand']
  %s0 = inlined_call_operand.hbm [shape: f32[2,8,256], index: 0, kind: input, shape index: {}]
  %s1 = inlined_call_operand.vmem [shape: f32[8,72], index: 1, kind: input, shape index: {}]
  %s2 = inlined_call_operand.vmem [shape: f32[8,1], index: 2, kind: input, shape index: {}]
  %s3 = inlined_call_operand.vmem [shape: f32[8,72], index: 3, kind: input, shape index: {}]
  %s4 = inlined_call_operand.vmem [shape: f32[8,1], index: 4, kind: input, shape index: {}]
  %s5 = inlined_call_operand.hbm [shape: f32[9,256], index: 5, kind: input, shape index: {}]
  %s6 = inlined_call_operand.hbm [shape: f32[2,8,256], index: 6, kind: output, shape index: {}]
  %s7 = sld [smem:[#allocation0]]
  $region65: #{tpu_custom_call.1} parent=0
    _
  %s9 = ssub.s32 1, %s7
  %s10 = scalar_select 0, %s9, %s7
  $region1: #{tpu_custom_call.1} parent=0
    #allocation3 [shape = 'u8[16384]{0}', space=vmem, size = 0x4000, scoped, tag = 'input window, operand 0']
    #allocation4 [shape = 's32[2]{0}', space=sflag, size = 0x8, scoped, tag = 'scoped memory for tpu_custom_call.1']
    #allocation5 [shape = 's32[2]{0}', space=sflag, size = 0x8, scoped, tag = 'scoped memory for tpu_custom_call.1']
    #allocation6 [shape = 'u8[16384]{0}', space=vmem, size = 0x4000, scoped, tag = 'input window, operand 5, single buffered']
    #allocation7 [shape = 's32[1]{0}', space=sflag, size = 0x4, scoped, tag = 'scoped memory for tpu_custom_call.1']
    #allocation8 [shape = 'u8[16384]{0}', space=vmem, size = 0x4000, scoped, tag = 'output window, operand 0']
    %11 = vsyncpa [#allocation4], 0
    %s12 = scalar_lea.sflag [#allocation4], 1
    %13 = vsyncpa %s12, 0
    %14 = vsyncpa [#allocation7], 0
    %15 = vsyncpa [#allocation5], 0
    %s16 = scalar_lea.sflag [#allocation5], 1
    %17 = vsyncpa %s16, 0
    loop: start=0, step=1, limit=4
    $region2: #{tpu_custom_call.1} parent=1 // loop_pre_header
      _
    $region3: #{tpu_custom_call.1} parent=1 // loop_header
      %s19 = sphi 0, %s23
      %p20 = scmp.ge.s32.totalorder %s19, 4
      %s29 = sphi 0, %s31
      %s32 = sphi 0, %s29
      %s33 = sphi 0, %s32
      %s49 = sphi 0, %s33
      %s53 = sphi 0, %s53
      %s55 = sphi 0, %s53
      %s56 = sphi 0, %s55
      %s70 = sphi 0, %s56
      %s74 = sphi 0, %s74
      %s76 = sphi 0, %s74
      %s77 = sphi 0, %s76
      %s91 = sphi 0, %s77
      %s95 = sphi 0, %s95
      %s97 = sphi 0, %s95
      %s98 = sphi 0, %s97
      %s112 = sphi 0, %s98
      %s116 = sphi 0, %s116
      %s118 = sphi 0, %s116
      %s119 = sphi 0, %s118
      %s133 = sphi 0, %s119
      %s137 = sphi 0, %s137
      %s139 = sphi 0, %s137
      %s140 = sphi 0, %s139
      %s154 = sphi 0, %s140
      %s160 = sphi 0, %s162
      %s163 = sphi 0, %s160
      %s164 = sphi 0, %s163
      %s180 = sphi 0, %s164
    $region4: #{tpu_custom_call.1} parent=1 // loop_header_branch
      %22 = sbr.rel (%p20) target = $region8
    $region5: #{tpu_custom_call.1} parent=1 // loop_body
      %s24 = ssub.s32 %s19, 1
      %s25 = ssub.s32 %s19, 2
      %s26 = sadd.s32 %s19, 1
      %s27 = ssub.s32 %s19, %s26
      %p28 = scmp.eq.s32.totalorder %s27, 0
      %s30 = sadd.s32 %s29, 1
      %s31 = scalar_select %p28, %s29, %s30
      %p34 = pneg %p28
      %p35 = scmp.eq.s32.totalorder %s19, 1
      %p36 = por %p34, %p35
      %p37 = scmp.ne.s32.totalorder %s29, %s32
      %p38 = scmp.eq.s32.totalorder %s19, 0
      %p39 = por %p37, %p38
      %p40 = scmp.ne.s32.totalorder %s29, %s32
      %p41 = scmp.eq.s32.totalorder %s24, 1
      %p42 = por %p40, %p41
      %p43 = scmp.ne.s32.totalorder %s32, %s33
      %p44 = scmp.eq.s32.totalorder %s24, 0
      %p45 = por %p43, %p44
      %p46 = scmp.ne.s32.totalorder %s32, %s33
      %p47 = scmp.eq.s32.totalorder %s25, 1
      %p48 = por %p46, %p47
      %p50 = scmp.ne.s32.totalorder %s33, %s49
      %p51 = scmp.eq.s32.totalorder %s25, 0
      %p52 = por %p50, %p51
      %s54 = sadd.s32 %s53, 1
      %p57 = scmp.eq.s32.totalorder %s19, 1
      %p58 = scmp.ne.s32.totalorder %s53, %s55
      %p59 = scmp.eq.s32.totalorder %s19, 0
      %p60 = por %p58, %p59
      %p61 = scmp.ne.s32.totalorder %s53, %s55
      %p62 = scmp.eq.s32.totalorder %s24, 1
      %p63 = por %p61, %p62
      %p64 = scmp.ne.s32.totalorder %s55, %s56
      %p65 = scmp.eq.s32.totalorder %s24, 0
      %p66 = por %p64, %p65
      %p67 = scmp.ne.s32.totalorder %s55, %s56
      %p68 = scmp.eq.s32.totalorder %s25, 1
      %p69 = por %p67, %p68
      %p71 = scmp.ne.s32.totalorder %s56, %s70
      %p72 = scmp.eq.s32.totalorder %s25, 0
      %p73 = por %p71, %p72
      %s75 = sadd.s32 %s74, 1
      %p78 = scmp.eq.s32.totalorder %s19, 1
      %p79 = scmp.ne.s32.totalorder %s74, %s76
      %p80 = scmp.eq.s32.totalorder %s19, 0
      %p81 = por %p79, %p80
      %p82 = scmp.ne.s32.totalorder %s74, %s76
      %p83 = scmp.eq.s32.totalorder %s24, 1
      %p84 = por %p82, %p83
      %p85 = scmp.ne.s32.totalorder %s76, %s77
      %p86 = scmp.eq.s32.totalorder %s24, 0
      %p87 = por %p85, %p86
      %p88 = scmp.ne.s32.totalorder %s76, %s77
      %p89 = scmp.eq.s32.totalorder %s25, 1
      %p90 = por %p88, %p89
      %p92 = scmp.ne.s32.totalorder %s77, %s91
      %p93 = scmp.eq.s32.totalorder %s25, 0
      %p94 = por %p92, %p93
      %s96 = sadd.s32 %s95, 1
      %p99 = scmp.eq.s32.totalorder %s19, 1
      %p100 = scmp.ne.s32.totalorder %s95, %s97
      %p101 = scmp.eq.s32.totalorder %s19, 0
      %p102 = por %p100, %p101
      %p103 = scmp.ne.s32.totalorder %s95, %s97
      %p104 = scmp.eq.s32.totalorder %s24, 1
      %p105 = por %p103, %p104
      %p106 = scmp.ne.s32.totalorder %s97, %s98
      %p107 = scmp.eq.s32.totalorder %s24, 0
      %p108 = por %p106, %p107
      %p109 = scmp.ne.s32.totalorder %s97, %s98
      %p110 = scmp.eq.s32.totalorder %s25, 1
      %p111 = por %p109, %p110
      %p113 = scmp.ne.s32.totalorder %s98, %s112
      %p114 = scmp.eq.s32.totalorder %s25, 0
      %p115 = por %p113, %p114
      %s117 = sadd.s32 %s116, 1
      %p120 = scmp.eq.s32.totalorder %s19, 1
      %p121 = scmp.ne.s32.totalorder %s116, %s118
      %p122 = scmp.eq.s32.totalorder %s19, 0
      %p123 = por %p121, %p122
      %p124 = scmp.ne.s32.totalorder %s116, %s118
      %p125 = scmp.eq.s32.totalorder %s24, 1
      %p126 = por %p124, %p125
      %p127 = scmp.ne.s32.totalorder %s118, %s119
      %p128 = scmp.eq.s32.totalorder %s24, 0
      %p129 = por %p127, %p128
      %p130 = scmp.ne.s32.totalorder %s118, %s119
      %p131 = scmp.eq.s32.totalorder %s25, 1
      %p132 = por %p130, %p131
      %p134 = scmp.ne.s32.totalorder %s119, %s133
      %p135 = scmp.eq.s32.totalorder %s25, 0
      %p136 = por %p134, %p135
      %s138 = sadd.s32 %s137, 1
      %p141 = scmp.eq.s32.totalorder %s19, 1
      %p142 = scmp.ne.s32.totalorder %s137, %s139
      %p143 = scmp.eq.s32.totalorder %s19, 0
      %p144 = por %p142, %p143
      %p145 = scmp.ne.s32.totalorder %s137, %s139
      %p146 = scmp.eq.s32.totalorder %s24, 1
      %p147 = por %p145, %p146
      %p148 = scmp.ne.s32.totalorder %s139, %s140
      %p149 = scmp.eq.s32.totalorder %s24, 0
      %p150 = por %p148, %p149
      %p151 = scmp.ne.s32.totalorder %s139, %s140
      %p152 = scmp.eq.s32.totalorder %s25, 1
      %p153 = por %p151, %p152
      %p155 = scmp.ne.s32.totalorder %s140, %s154
      %p156 = scmp.eq.s32.totalorder %s25, 0
      %p157 = por %p155, %p156
      %s158 = ssub.s32 %s19, %s26
      %p159 = scmp.eq.s32.totalorder %s158, 0
      %s161 = sadd.s32 %s160, 1
      %s162 = scalar_select %p159, %s160, %s161
      %p165 = pneg %p159
      %p166 = scmp.eq.s32.totalorder %s19, 1
      %p167 = por %p165, %p166
      %p168 = scmp.ne.s32.totalorder %s160, %s163
      %p169 = scmp.eq.s32.totalorder %s19, 0
      %p170 = por %p168, %p169
      %p171 = scmp.ne.s32.totalorder %s160, %s163
      %p172 = scmp.eq.s32.totalorder %s24, 1
      %p173 = por %p171, %p172
      %p174 = scmp.ne.s32.totalorder %s163, %s164
      %p175 = scmp.eq.s32.totalorder %s24, 0
      %p176 = por %p174, %p175
      %p177 = scmp.ne.s32.totalorder %s163, %s164
      %p178 = scmp.eq.s32.totalorder %s25, 1
      %p179 = por %p177, %p178
      %p181 = scmp.ne.s32.totalorder %s164, %s180
      %p182 = scmp.eq.s32.totalorder %s25, 0
      %p183 = por %p181, %p182
      %p184 = scmp.le.s32.totalorder 1, %s19
      %p185 = scmp.lt.s32.totalorder %s19, 3
      %p186 = pnand %p184, %p185
      %p187 = pneg %p186
      // Predicated region
      $region9: #{tpu_custom_call.1} parent=5 // pred_check
        _
      $region10: #{tpu_custom_call.1} parent=5 // pred_check_branch
        %189 = sbr.rel (%p186) target = $region12
      $region11: #{tpu_custom_call.1} parent=5 // pred_region
        %s190 = ssub.s32 %s19, 1
        // Predicated region
        $region13: #{tpu_custom_call.1} parent=11 // pred_check
          %p191 = pneg %p66
        $region14: #{tpu_custom_call.1} parent=11 // pred_check_branch
          %193 = sbr.rel (%p191) target = $region16
        $region15: #{tpu_custom_call.1} parent=11 // pred_region
          _
        $region16: #{tpu_custom_call.1} parent=11 // pred_fallthru
          _
        // Predicated region
        $region17: #{tpu_custom_call.1} parent=11 // pred_check
          %p194 = pneg %p87
        $region18: #{tpu_custom_call.1} parent=11 // pred_check_branch
          %196 = sbr.rel (%p194) target = $region20
        $region19: #{tpu_custom_call.1} parent=11 // pred_region
          _
        $region20: #{tpu_custom_call.1} parent=11 // pred_fallthru
          _
        // Predicated region
        $region21: #{tpu_custom_call.1} parent=11 // pred_check
          %p197 = pneg %p108
        $region22: #{tpu_custom_call.1} parent=11 // pred_check_branch
          %199 = sbr.rel (%p197) target = $region24
        $region23: #{tpu_custom_call.1} parent=11 // pred_region
          _
        $region24: #{tpu_custom_call.1} parent=11 // pred_fallthru
          _
        // Predicated region
        $region25: #{tpu_custom_call.1} parent=11 // pred_check
          %p200 = pneg %p129
        $region26: #{tpu_custom_call.1} parent=11 // pred_check_branch
          %202 = sbr.rel (%p200) target = $region28
        $region27: #{tpu_custom_call.1} parent=11 // pred_region
          _
        $region28: #{tpu_custom_call.1} parent=11 // pred_fallthru
          _
        // Predicated region
        $region29: #{tpu_custom_call.1} parent=11 // pred_check
          %p203 = pneg %p150
        $region30: #{tpu_custom_call.1} parent=11 // pred_check_branch
          %205 = sbr.rel (%p203) target = $region32
        $region31: #{tpu_custom_call.1} parent=11 // pred_region
          %207 = vsyncadd [#allocation7], 0
          %s208 = sshll.u32 %s5, 4
          %s209 = int_to_ptr.hbm [resolvable:$true] %s208
          %s210 = sshll.u32 [#allocation6], 4
          %s211 = int_to_ptr.vmem [resolvable:$true] %s210
          %216 = dma.hbm_to_vmem [thread:$0]  %s209, 512, %s211, [#allocation7], 256, 256, 16
        $region32: #{tpu_custom_call.1} parent=11 // pred_fallthru
          _
      $region12: #{tpu_custom_call.1} parent=5 // pred_fallthru
        _
      %p217 = scmp.lt.s32.totalorder %s19, 2
      // Predicated region
      $region33: #{tpu_custom_call.1} parent=5 // pred_check
        %p218 = pneg %p217
      $region34: #{tpu_custom_call.1} parent=5 // pred_check_branch
        %220 = sbr.rel (%p218) target = $region36
      $region35: #{tpu_custom_call.1} parent=5 // pred_region
        // Predicated region
        $region37: #{tpu_custom_call.1} parent=35 // pred_check
          %p221 = pneg %p39
        $region38: #{tpu_custom_call.1} parent=35 // pred_check_branch
          %223 = sbr.rel (%p221) target = $region40
        $region39: #{tpu_custom_call.1} parent=35 // pred_region
          %s224 = sand.u32 %s29, 1
          %s225 = scalar_lea.sflag [#allocation4], %s224
          %s226 = sand.u32 %s29, 1
          %s227 = smul.addr %s226, 16
          %s228 = scalar_lea.vmem [#allocation3], %s227
          %230 = vsyncadd %s225, 0
          %s231 = smul.addr %s19, 2
          %s232 = smul.addr %s231, 8
          %s233 = scalar_lea.hbm %s0, %s232
          %s235 = sshll.u32 %s233, 4
          %s236 = int_to_ptr.hbm [resolvable:$true] %s235
          %s237 = sshll.u32 %s228, 4
          %s238 = int_to_ptr.vmem [resolvable:$true] %s237
          %240 = dma.hbm_to_vmem [thread:$0]  %s236, 256, %s238, %s225
        $region40: #{tpu_custom_call.1} parent=35 // pred_fallthru
          _
      $region36: #{tpu_custom_call.1} parent=5 // pred_fallthru
        _
      %p241 = scmp.le.s32.totalorder 1, %s19
      %p242 = scmp.lt.s32.totalorder %s19, 3
      %p243 = pnand %p241, %p242
      %p244 = pneg %p243
      // Predicated region
      $region41: #{tpu_custom_call.1} parent=5 // pred_check
        _
      $region42: #{tpu_custom_call.1} parent=5 // pred_check_branch
        %246 = sbr.rel (%p243) target = $region44
      $region43: #{tpu_custom_call.1} parent=5 // pred_region
        %s247 = ssub.s32 %s19, 1
        %s248 = sand.u32 %s32, 1
        %s249 = scalar_lea.sflag [#allocation4], %s248
        %s250 = sand.u32 %s32, 1
        %s251 = smul.addr %s250, 16
        %s252 = scalar_lea.vmem [#allocation3], %s251
        // Predicated region
        $region45: #{tpu_custom_call.1} parent=43 // pred_check
          %p253 = pneg %p45
        $region46: #{tpu_custom_call.1} parent=43 // pred_check_branch
          %255 = sbr.rel (%p253) target = $region48
        $region47: #{tpu_custom_call.1} parent=43 // pred_region
          %257 = dma.done %s249, 256
        $region48: #{tpu_custom_call.1} parent=43 // pred_fallthru
          _
        // Predicated region
        $region49: #{tpu_custom_call.1} parent=43 // pred_check
          %p258 = pneg %p150
        $region50: #{tpu_custom_call.1} parent=43 // pred_check_branch
          %260 = sbr.rel (%p258) target = $region52
        $region51: #{tpu_custom_call.1} parent=43 // pred_region
          %262 = dma.done [#allocation7], 512
        $region52: #{tpu_custom_call.1} parent=43 // pred_fallthru
          _
        %s263 = sand.u32 %s32, 1
        %s264 = scalar_lea.sflag [#allocation4], %s263
        %s265 = sand.u32 %s32, 1
        %s266 = smul.addr %s265, 16
        %s267 = scalar_lea.vmem [#allocation3], %s266
        %p268 = pneg %p45
        %p269 = pneg %p42
        %p270 = pneg %p66
        %p271 = pneg %p63
        %p272 = pneg %p87
        %p273 = pneg %p84
        %p274 = pneg %p108
        %p275 = pneg %p105
        %p276 = pneg %p129
        %p277 = pneg %p126
        %p278 = pneg %p150
        %p279 = pneg %p147
        %p280 = pneg %p176
        %p281 = pneg %p173
        %s282 = sand.u32 %s163, 1
        %s283 = scalar_lea.sflag [#allocation5], %s282
        %s284 = sand.u32 %s163, 1
        %s285 = smul.addr %s284, 16
        %s286 = scalar_lea.vmem [#allocation8], %s285
        %v287 = vld [vmem:[#allocation6] sm:$0xff]
        %v288 = vld [vmem:[#allocation6 + $0x8] sm:$0xff]
        %v289 = vld [vmem:[#allocation6 + $0x10] sm:$0x1]
        %v290 = vld [vmem:[#allocation6 + $0x18] sm:$0x1]
        %v291 = vld [vmem:[%s252] sm:$0xff]
        %v292 = vld [vmem:[%s252 + $0x8] sm:$0xff]
        %293 = vrot.lane.b32.xlu0 %v291, 17
        %v294 = vpop.permute.xlu0 %293
        %295 = vrot.lane.b32.xlu0 %v292, 17
        %v296 = vpop.permute.xlu0 %295
        %v297 = vlaneseq
        %v298 = vand.u32 %v297, 127
        %vm299 = vcmp.lt.s32.totalorder %v298, 17
        %v300 = vsel %vm299, %v294, %v296
        %v301 = vsel %vm299, %v296, %v294
        %v302 = vperm.slane %v287, 0
        %v303 = vperm.slane %v288, 0
        %v304 = vmul.f32 %v301, %v302
        %v305 = vmul.f32 %v300, %v303
        %306 = vst [vmem:[#allocation2] sm:$0xff] %v304
        %307 = vst [vmem:[#allocation2 + $0x8] sm:$0xff] %v305
        %308 = vrot.lane.b32.xlu0 %v291, 16
        %v309 = vpop.permute.xlu0 %308
        %310 = vrot.lane.b32.xlu0 %v292, 16
        %v311 = vpop.permute.xlu0 %310
        %vm312 = vcmp.lt.s32.totalorder %v298, 16
        %v313 = vsel %vm312, %v309, %v311
        %v314 = vsel %vm312, %v311, %v309
        %v315 = vperm.slane %v287, 1
        %v316 = vperm.slane %v288, 1
        %v317 = vmul.f32 %v314, %v315
        %v318 = vmul.f32 %v313, %v316
        %319 = vst [vmem:[#allocation2 + $0x10] sm:$0xff] %v317
        %320 = vst [vmem:[#allocation2 + $0x18] sm:$0xff] %v318
        %321 = vrot.lane.b32.xlu0 %v291, 15
        %v322 = vpop.permute.xlu0 %321
        %323 = vrot.lane.b32.xlu0 %v292, 15
        %v324 = vpop.permute.xlu0 %323
        %vm325 = vcmp.lt.s32.totalorder %v298, 15
        %v326 = vsel %vm325, %v322, %v324
        %v327 = vsel %vm325, %v324, %v322
        %v328 = vperm.slane %v287, 2
        %v329 = vperm.slane %v288, 2
        %v330 = vmul.f32 %v327, %v328
        %v331 = vmul.f32 %v326, %v329
        %332 = vst [vmem:[#allocation2 + $0x20] sm:$0xff] %v330
        %333 = vst [vmem:[#allocation2 + $0x28] sm:$0xff] %v331
        %334 = vrot.lane.b32.xlu0 %v291, 1
        %v335 = vpop.permute.xlu0 %334
        %336 = vrot.lane.b32.xlu0 %v292, 1
        %v337 = vpop.permute.xlu0 %336
        %vm338 = vcmp.lt.s32.totalorder %v298, 1
        %v339 = vsel %vm338, %v335, %v337
        %v340 = vsel %vm338, %v337, %v335
        %v341 = vperm.slane %v287, 3
        %v342 = vperm.slane %v288, 3
        %v343 = vmul.f32 %v340, %v341
        %v344 = vmul.f32 %v339, %v342
        %345 = vst [vmem:[#allocation2 + $0x30] sm:$0xff] %v343
        %346 = vst [vmem:[#allocation2 + $0x38] sm:$0xff] %v344
        %347 = vst [vmem:[#allocation2 + $0x40] sm:$0xff] %v291
        %348 = vst [vmem:[#allocation2 + $0x48] sm:$0xff] %v292
        %349 = vrot.lane.b32.xlu0 %v291, 127
        %v350 = vpop.permute.xlu0 %349
        %351 = vrot.lane.b32.xlu0 %v292, 127
        %v352 = vpop.permute.xlu0 %351
        %vm353 = vcmp.lt.s32.totalorder %v298, 127
        %v354 = vsel %vm353, %v350, %v352
        %v355 = vsel %vm353, %v352, %v350
        %v356 = vperm.slane %v287, 5
        %v357 = vperm.slane %v288, 5
        %v358 = vmul.f32 %v354, %v356
        %v359 = vmul.f32 %v355, %v357
        %360 = vst [vmem:[#allocation2 + $0x50] sm:$0xff] %v358
        %361 = vst [vmem:[#allocation2 + $0x58] sm:$0xff] %v359
        %362 = vrot.lane.b32.xlu0 %v291, 113
        %v363 = vpop.permute.xlu0 %362
        %364 = vrot.lane.b32.xlu0 %v292, 113
        %v365 = vpop.permute.xlu0 %364
        %vm366 = vcmp.lt.s32.totalorder %v298, 113
        %v367 = vsel %vm366, %v363, %v365
        %v368 = vsel %vm366, %v365, %v363
        %v369 = vperm.slane %v287, 6
        %v370 = vperm.slane %v288, 6
        %v371 = vmul.f32 %v367, %v369
        %v372 = vmul.f32 %v368, %v370
        %373 = vst [vmem:[#allocation2 + $0x60] sm:$0xff] %v371
        %374 = vst [vmem:[#allocation2 + $0x68] sm:$0xff] %v372
        %375 = vrot.lane.b32.xlu0 %v291, 112
        %v376 = vpop.permute.xlu0 %375
        %377 = vrot.lane.b32.xlu0 %v292, 112
        %v378 = vpop.permute.xlu0 %377
        %vm379 = vcmp.lt.s32.totalorder %v298, 112
        %v380 = vsel %vm379, %v376, %v378
        %v381 = vsel %vm379, %v378, %v376
        %v382 = vperm.slane %v287, 7
        %v383 = vperm.slane %v288, 7
        %v384 = vmul.f32 %v380, %v382
        %v385 = vmul.f32 %v381, %v383
        %386 = vst [vmem:[#allocation2 + $0x70] sm:$0xff] %v384
        %387 = vst [vmem:[#allocation2 + $0x78] sm:$0xff] %v385
        %388 = vrot.lane.b32.xlu0 %v291, 111
        %v389 = vpop.permute.xlu0 %388
        %390 = vrot.lane.b32.xlu0 %v292, 111
        %v391 = vpop.permute.xlu0 %390
        %vm392 = vcmp.lt.s32.totalorder %v298, 111
        %v393 = vsel %vm392, %v389, %v391
        %v394 = vsel %vm392, %v391, %v389
        %v395 = vperm.slane %v289, 0
        %v396 = vperm.slane %v290, 0
        %v397 = vmul.f32 %v393, %v395
        %v398 = vmul.f32 %v394, %v396
        %399 = vst [vmem:[#allocation2 + $0x80] sm:$0xff] %v397
        %400 = vst [vmem:[#allocation2 + $0x88] sm:$0xff] %v398
        %v401 = vld [vmem:[%s1] sm:$0xff]
        %v402 = vld [vmem:[#allocation2] sm:$0xff]
        %v403 = vld [vmem:[#allocation2 + $0x8] sm:$0xff]
        %v404 = vld [vmem:[#allocation2 + $0x10] sm:$0xff]
        %v405 = vld [vmem:[#allocation2 + $0x18] sm:$0xff]
        %v406 = vld [vmem:[#allocation2 + $0x20] sm:$0xff]
        %v407 = vld [vmem:[#allocation2 + $0x28] sm:$0xff]
        %v408 = vld [vmem:[#allocation2 + $0x30] sm:$0xff]
        %v409 = vld [vmem:[#allocation2 + $0x38] sm:$0xff]
        %v410 = vld [vmem:[#allocation2 + $0x40] sm:$0xff]
        %v411 = vld [vmem:[#allocation2 + $0x48] sm:$0xff]
        %v412 = vld [vmem:[#allocation2 + $0x50] sm:$0xff]
        %v413 = vld [vmem:[#allocation2 + $0x58] sm:$0xff]
        %v414 = vld [vmem:[#allocation2 + $0x60] sm:$0xff]
        %v415 = vld [vmem:[#allocation2 + $0x68] sm:$0xff]
        %v416 = vld [vmem:[#allocation2 + $0x70] sm:$0xff]
        %v417 = vld [vmem:[#allocation2 + $0x78] sm:$0xff]
        %v418 = vld [vmem:[#allocation2 + $0x80] sm:$0xff]
        %v419 = vld [vmem:[#allocation2 + $0x88] sm:$0xff]
        %v420 = vld [vmem:[%s2] sm:$0xff]
        %422 = vset.pattern.permute.xlu0 0
        %423 = vperm.xlu0 %422, %v420
        %v424 = vpop.permute.xlu0 %423
        %vm426 = vcmask 588800
        %v428 = vsel %vm426, %v401, 0
        %430 = vmatpush.msra.mxu0 0.0
        %431 = vmatpush.msra.mxu0 0.0
        %432 = vmatpush.msra.mxu0 0.0
        %433 = vmatpush.msra.mxu0 0.0
        %434 = vmatpush.msra.mxu0 0.0
        %435 = vmatpush.msra.mxu0 0.0
        %436 = vmatpush.msra.mxu0 0.0
        %437 = vmatpush.msra.mxu0 %v418
        %438 = vmatpush.msra.mxu0 %v416
        %439 = vmatpush.msra.mxu0 %v414
        %440 = vmatpush.msra.mxu0 %v412
        %441 = vmatpush.msra.mxu0 %v410
        %442 = vmatpush.msra.mxu0 %v408
        %443 = vmatpush.msra.mxu0 %v406
        %444 = vmatpush.msra.mxu0 %v404
        %445 = vmatpush.msra.mxu0 %v402
        %446 = vmatmul.f32.gmra.mxu0 %v428
        %v447 = vpop.f32.mrf.mxu0
        %v448 = vadd.f32 %v424, %v447
        %449 = vdwg.mxu0
        %450 = vmatpush.msra.mxu0 0.0
        %451 = vmatpush.msra.mxu0 0.0
        %452 = vmatpush.msra.mxu0 0.0
        %453 = vmatpush.msra.mxu0 0.0
        %454 = vmatpush.msra.mxu0 0.0
        %455 = vmatpush.msra.mxu0 0.0
        %456 = vmatpush.msra.mxu0 0.0
        %457 = vmatpush.msra.mxu0 %v419
        %458 = vmatpush.msra.mxu0 %v417
        %459 = vmatpush.msra.mxu0 %v415
        %460 = vmatpush.msra.mxu0 %v413
        %461 = vmatpush.msra.mxu0 %v411
        %462 = vmatpush.msra.mxu0 %v409
        %463 = vmatpush.msra.mxu0 %v407
        %464 = vmatpush.msra.mxu0 %v405
        %465 = vmatpush.msra.mxu0 %v403
        %466 = vmatmul.f32.gmra.mxu0 %v428
        %v467 = vpop.f32.mrf.mxu0
        %v468 = vadd.f32 %v424, %v467
        %469 = vdwg.mxu0
        %v470 = vmax.f32 %v448, 0.0
        %v471 = vmax.f32 %v468, 0.0
        %472 = vrot.lane.b32.xlu0 %v470, 17
        %v473 = vpop.permute.xlu0 %472
        %474 = vrot.lane.b32.xlu0 %v471, 17
        %v475 = vpop.permute.xlu0 %474
        %v476 = vsel %vm299, %v473, %v475
        %v477 = vsel %vm299, %v475, %v473
        %v478 = vmul.f32 %v477, %v302
        %v479 = vmul.f32 %v476, %v303
        %480 = vst [vmem:[#allocation2] sm:$0xff] %v478
        %481 = vst [vmem:[#allocation2 + $0x8] sm:$0xff] %v479
        %482 = vrot.lane.b32.xlu0 %v470, 16
        %v483 = vpop.permute.xlu0 %482
        %484 = vrot.lane.b32.xlu0 %v471, 16
        %v485 = vpop.permute.xlu0 %484
        %v486 = vsel %vm312, %v483, %v485
        %v487 = vsel %vm312, %v485, %v483
        %v488 = vmul.f32 %v487, %v315
        %v489 = vmul.f32 %v486, %v316
        %490 = vst [vmem:[#allocation2 + $0x10] sm:$0xff] %v488
        %491 = vst [vmem:[#allocation2 + $0x18] sm:$0xff] %v489
        %492 = vrot.lane.b32.xlu0 %v470, 15
        %v493 = vpop.permute.xlu0 %492
        %494 = vrot.lane.b32.xlu0 %v471, 15
        %v495 = vpop.permute.xlu0 %494
        %v496 = vsel %vm325, %v493, %v495
        %v497 = vsel %vm325, %v495, %v493
        %v498 = vmul.f32 %v497, %v328
        %v499 = vmul.f32 %v496, %v329
        %500 = vst [vmem:[#allocation2 + $0x20] sm:$0xff] %v498
        %501 = vst [vmem:[#allocation2 + $0x28] sm:$0xff] %v499
        %502 = vrot.lane.b32.xlu0 %v470, 1
        %v503 = vpop.permute.xlu0 %502
        %504 = vrot.lane.b32.xlu0 %v471, 1
        %v505 = vpop.permute.xlu0 %504
        %v506 = vsel %vm338, %v503, %v505
        %v507 = vsel %vm338, %v505, %v503
        %v508 = vmul.f32 %v507, %v341
        %v509 = vmul.f32 %v506, %v342
        %510 = vst [vmem:[#allocation2 + $0x30] sm:$0xff] %v508
        %511 = vst [vmem:[#allocation2 + $0x38] sm:$0xff] %v509
        %512 = vst [vmem:[#allocation2 + $0x40] sm:$0xff] %v470
        %513 = vst [vmem:[#allocation2 + $0x48] sm:$0xff] %v471
        %514 = vrot.lane.b32.xlu0 %v470, 127
        %v515 = vpop.permute.xlu0 %514
        %516 = vrot.lane.b32.xlu0 %v471, 127
        %v517 = vpop.permute.xlu0 %516
        %v518 = vsel %vm353, %v515, %v517
        %v519 = vsel %vm353, %v517, %v515
        %v520 = vmul.f32 %v518, %v356
        %v521 = vmul.f32 %v519, %v357
        %522 = vst [vmem:[#allocation2 + $0x50] sm:$0xff] %v520
        %523 = vst [vmem:[#allocation2 + $0x58] sm:$0xff] %v521
        %524 = vrot.lane.b32.xlu0 %v470, 113
        %v525 = vpop.permute.xlu0 %524
        %526 = vrot.lane.b32.xlu0 %v471, 113
        %v527 = vpop.permute.xlu0 %526
        %v528 = vsel %vm366, %v525, %v527
        %v529 = vsel %vm366, %v527, %v525
        %v530 = vmul.f32 %v528, %v369
        %v531 = vmul.f32 %v529, %v370
        %532 = vst [vmem:[#allocation2 + $0x60] sm:$0xff] %v530
        %533 = vst [vmem:[#allocation2 + $0x68] sm:$0xff] %v531
        %534 = vrot.lane.b32.xlu0 %v470, 112
        %v535 = vpop.permute.xlu0 %534
        %536 = vrot.lane.b32.xlu0 %v471, 112
        %v537 = vpop.permute.xlu0 %536
        %v538 = vsel %vm379, %v535, %v537
        %v539 = vsel %vm379, %v537, %v535
        %v540 = vmul.f32 %v538, %v382
        %v541 = vmul.f32 %v539, %v383
        %542 = vst [vmem:[#allocation2 + $0x70] sm:$0xff] %v540
        %543 = vst [vmem:[#allocation2 + $0x78] sm:$0xff] %v541
        %544 = vrot.lane.b32.xlu0 %v470, 111
        %v545 = vpop.permute.xlu0 %544
        %546 = vrot.lane.b32.xlu0 %v471, 111
        %v547 = vpop.permute.xlu0 %546
        %v548 = vsel %vm392, %v545, %v547
        %v549 = vsel %vm392, %v547, %v545
        %v550 = vmul.f32 %v548, %v395
        %v551 = vmul.f32 %v549, %v396
        %552 = vst [vmem:[#allocation2 + $0x80] sm:$0xff] %v550
        %553 = vst [vmem:[#allocation2 + $0x88] sm:$0xff] %v551
        %v554 = vld [vmem:[%s3] sm:$0xff]
        %v555 = vld [vmem:[#allocation2] sm:$0xff]
        %v556 = vld [vmem:[#allocation2 + $0x8] sm:$0xff]
        %v557 = vld [vmem:[#allocation2 + $0x10] sm:$0xff]
        %v558 = vld [vmem:[#allocation2 + $0x18] sm:$0xff]
        %v559 = vld [vmem:[#allocation2 + $0x20] sm:$0xff]
        %v560 = vld [vmem:[#allocation2 + $0x28] sm:$0xff]
        %v561 = vld [vmem:[#allocation2 + $0x30] sm:$0xff]
        %v562 = vld [vmem:[#allocation2 + $0x38] sm:$0xff]
        %v563 = vld [vmem:[#allocation2 + $0x40] sm:$0xff]
        %v564 = vld [vmem:[#allocation2 + $0x48] sm:$0xff]
        %v565 = vld [vmem:[#allocation2 + $0x50] sm:$0xff]
        %v566 = vld [vmem:[#allocation2 + $0x58] sm:$0xff]
        %v567 = vld [vmem:[#allocation2 + $0x60] sm:$0xff]
        %v568 = vld [vmem:[#allocation2 + $0x68] sm:$0xff]
        %v569 = vld [vmem:[#allocation2 + $0x70] sm:$0xff]
        %v570 = vld [vmem:[#allocation2 + $0x78] sm:$0xff]
        %v571 = vld [vmem:[#allocation2 + $0x80] sm:$0xff]
        %v572 = vld [vmem:[#allocation2 + $0x88] sm:$0xff]
        %v573 = vld [vmem:[%s4] sm:$0xff]
        %575 = vset.pattern.permute.xlu0 0
        %576 = vperm.xlu0 %575, %v573
        %v577 = vpop.permute.xlu0 %576
        %v580 = vsel %vm426, %v554, 0
        %582 = vmatpush.msra.mxu0 0.0
        %583 = vmatpush.msra.mxu0 0.0
        %584 = vmatpush.msra.mxu0 0.0
        %585 = vmatpush.msra.mxu0 0.0
        %586 = vmatpush.msra.mxu0 0.0
        %587 = vmatpush.msra.mxu0 0.0
        %588 = vmatpush.msra.mxu0 0.0
        %589 = vmatpush.msra.mxu0 %v571
        %590 = vmatpush.msra.mxu0 %v569
        %591 = vmatpush.msra.mxu0 %v567
        %592 = vmatpush.msra.mxu0 %v565
        %593 = vmatpush.msra.mxu0 %v563
        %594 = vmatpush.msra.mxu0 %v561
        %595 = vmatpush.msra.mxu0 %v559
        %596 = vmatpush.msra.mxu0 %v557
        %597 = vmatpush.msra.mxu0 %v555
        %598 = vmatmul.f32.gmra.mxu0 %v580
        %v599 = vpop.f32.mrf.mxu0
        %v600 = vadd.f32 %v577, %v599
        %601 = vdwg.mxu0
        %602 = vmatpush.msra.mxu0 0.0
        %603 = vmatpush.msra.mxu0 0.0
        %604 = vmatpush.msra.mxu0 0.0
        %605 = vmatpush.msra.mxu0 0.0
        %606 = vmatpush.msra.mxu0 0.0
        %607 = vmatpush.msra.mxu0 0.0
        %608 = vmatpush.msra.mxu0 0.0
        %609 = vmatpush.msra.mxu0 %v572
        %610 = vmatpush.msra.mxu0 %v570
        %611 = vmatpush.msra.mxu0 %v568
        %612 = vmatpush.msra.mxu0 %v566
        %613 = vmatpush.msra.mxu0 %v564
        %614 = vmatpush.msra.mxu0 %v562
        %615 = vmatpush.msra.mxu0 %v560
        %616 = vmatpush.msra.mxu0 %v558
        %617 = vmatpush.msra.mxu0 %v556
        %618 = vmatmul.f32.gmra.mxu0 %v580
        %v619 = vpop.f32.mrf.mxu0
        %v620 = vadd.f32 %v577, %v619
        %621 = vdwg.mxu0
        %v622 = vadd.f32 %v600, %v291
        %v623 = vadd.f32 %v620, %v292
        %v624 = vmax.f32 %v622, 0.0
        %v625 = vmax.f32 %v623, 0.0
        %626 = vst [vmem:[%s286] sm:$0xff] %v624
        %627 = vst [vmem:[%s286 + $0x8] sm:$0xff] %v625
        %s628 = sand.u32 %s163, 1
        %s629 = scalar_lea.sflag [#allocation5], %s628
        %s630 = sand.u32 %s163, 1
        %s631 = smul.addr %s630, 16
        %s632 = scalar_lea.vmem [#allocation8], %s631
        // Predicated region
        $region53: #{tpu_custom_call.1} parent=43 // pred_check
          %p633 = pneg %p173
        $region54: #{tpu_custom_call.1} parent=43 // pred_check_branch
          %635 = sbr.rel (%p633) target = $region56
        $region55: #{tpu_custom_call.1} parent=43 // pred_region
          %637 = vsyncadd %s629, 0
          %s638 = smul.addr %s24, 2
          %s639 = smul.addr %s638, 8
          %s640 = scalar_lea.hbm %s6, %s639
          %s642 = sshll.u32 %s632, 4
          %s643 = int_to_ptr.vmem [resolvable:$true] %s642
          %s644 = sshll.u32 %s640, 4
          %s645 = int_to_ptr.hbm [resolvable:$true] %s644
          %647 = dma.vmem_to_hbm [thread:$0]  %s643, 256, %s645, %s629
        $region56: #{tpu_custom_call.1} parent=43 // pred_fallthru
          _
      $region44: #{tpu_custom_call.1} parent=5 // pred_fallthru
        _
      %p648 = scmp.le.s32.totalorder 2, %s19
      // Predicated region
      $region57: #{tpu_custom_call.1} parent=5 // pred_check
        %p649 = pneg %p648
      $region58: #{tpu_custom_call.1} parent=5 // pred_check_branch
        %651 = sbr.rel (%p649) target = $region60
      $region59: #{tpu_custom_call.1} parent=5 // pred_region
        %s652 = ssub.s32 %s19, 2
        // Predicated region
        $region61: #{tpu_custom_call.1} parent=59 // pred_check
          %p653 = pneg %p179
        $region62: #{tpu_custom_call.1} parent=59 // pred_check_branch
          %655 = sbr.rel (%p653) target = $region64
        $region63: #{tpu_custom_call.1} parent=59 // pred_region
          %s656 = sand.u32 %s164, 1
          %s657 = scalar_lea.sflag [#allocation5], %s656
          %s658 = sand.u32 %s164, 1
          %s659 = smul.addr %s658, 16
          %s660 = scalar_lea.vmem [#allocation8], %s659
          %662 = dma.done %s657, 256
        $region64: #{tpu_custom_call.1} parent=59 // pred_fallthru
          _
      $region60: #{tpu_custom_call.1} parent=5 // pred_fallthru
        _
    $region6: #{tpu_custom_call.1} parent=1 // loop_footer
      %s23 = sadd.s32 1, %s19
    $region7: #{tpu_custom_call.1} parent=1 // loop_footer_branch
      %18 = sbr.rel target = $region3
    $region8: #{tpu_custom_call.1} parent=1 // loop_exit
      _
    %663 = vsyncpa [#allocation4], 1
    %s664 = scalar_lea.sflag [#allocation4], 1
    %665 = vsyncpa %s664, 1
    %666 = vsyncpa [#allocation7], 1
    %667 = vsyncpa [#allocation5], 1
    %s668 = scalar_lea.sflag [#allocation5], 1
    %669 = vsyncpa %s668, 1

</llo_original>
